<compile_context>
chip_gen: v7x
topology: tpu7x:2x2x1
jax: 0.10.0
libtpu: 0.0.40
codegen_flags: <defaults>
</compile_context>

<pallas_src>
import functools
import math
import random

import numpy as np
import jax
import jax.numpy as jnp
from jax.experimental import pallas as pl
from jax.experimental.pallas import tpu as pltpu


def _round_up(v, m):
    return (v + m - 1) // m * m


# Tap descriptors: (phase_block, dy, dx) -> read pixel (y+dy, x+dx) of that
# phase block, zero outside the block's (Hb, Wb) grid.  Order must match the
# K-packing of the conv2 weights (k = ky*3 + kx).
_TAPS_S1 = tuple((0, ky - 1, kx - 1) for ky in range(3) for kx in range(3))
_TAPS_S2 = tuple((((ky - 1) % 2) * 2 + ((kx - 1) % 2),
                  (ky - 1) // 2, (kx - 1) // 2)
                 for ky in range(3) for kx in range(3))
_TAPS_T = ((0, 0, 0), (0, 0, 1), (0, 1, 0), (0, 1, 1))


def _build_taps(blocks, taps, Hb, Wb):
    """Build the K-packed conv RHS (T*C, M) in f32.

    Each tap is an XLU lane-roll of a phase block plus a border mask, so the
    whole 3x3 conv collapses into ONE MXU matmul with K = T*C."""
    M = blocks[0].shape[1]
    lane = jax.lax.broadcasted_iota(jnp.int32, (1, M), 1)
    xc = lane % Wb
    yr = (lane // Wb) % Hb
    rows = []
    for (blk, dy, dx) in taps:
        t = blocks[blk]
        off = dy * Wb + dx
        if off != 0:
            t = pltpu.roll(t, shift=(-off) % M, axis=1)
        valid = None
        if dx == 1:
            valid = xc < (Wb - 1)
        elif dx == -1:
            valid = xc > 0
        if dy == 1:
            v = yr < (Hb - 1)
            valid = v if valid is None else jnp.logical_and(valid, v)
        elif dy == -1:
            v = yr > 0
            valid = v if valid is None else jnp.logical_and(valid, v)
        if valid is not None:
            t = jnp.where(valid, t, 0.0)
        rows.append(t)
    return jnp.concatenate(rows, axis=0) if len(rows) > 1 else rows[0]


# ---------------------------------------------------------------------------
# Kernel A: fused 1x1 conv / linear in CM layout: relu?((w @ x) * s + b)
# ---------------------------------------------------------------------------
def _mm_cm_kernel(x_ref, w_ref, s_ref, b_ref, o_ref, *, relu):
    acc = jnp.dot(w_ref[...], x_ref[...], preferred_element_type=jnp.float32)
    acc = acc * s_ref[...] + b_ref[...]
    if relu:
        acc = jnp.maximum(acc, 0.0)
    o_ref[...] = acc.astype(o_ref.dtype)


def matmul_cm(x, w, s, b, relu=False, out_dtype=jnp.bfloat16):
    Cin, M = x.shape
    Cout = w.shape[0]
    x = x.astype(jnp.bfloat16)
    w = w.astype(jnp.bfloat16)
    s = s.reshape(Cout, 1).astype(jnp.float32)
    b = b.reshape(Cout, 1).astype(jnp.float32)
    if M <= 4096:          # single step: no per-step overhead on 1-TC v5e/v6e
        TM, grid = M, 1
    else:                  # big problems: >=2 lane-dense steps (v7x megacore)
        TM = 2048
        Mp = _round_up(M, TM)
        if Mp != M:
            x = jnp.pad(x, ((0, 0), (0, Mp - M)))
        grid = Mp // TM
    out = pl.pallas_call(
        functools.partial(_mm_cm_kernel, relu=relu),
        out_shape=jax.ShapeDtypeStruct((Cout, TM * grid), out_dtype),
        grid=(grid,),
        in_specs=[
            pl.BlockSpec((Cin, TM), lambda i: (0, i)),
            pl.BlockSpec((Cout, Cin), lambda i: (0, 0)),
            pl.BlockSpec((Cout, 1), lambda i: (0, 0)),
            pl.BlockSpec((Cout, 1), lambda i: (0, 0)),
        ],
        out_specs=pl.BlockSpec((Cout, TM), lambda i: (0, i)),
        compiler_params=pltpu.CompilerParams(dimension_semantics=("parallel",)),
    )(x, w, s, b)
    return out if TM * grid == M else out[:, :M]


# ---------------------------------------------------------------------------
# Kernel B: fused [K-packed 3x3 conv + bn2 + relu] -> [1x1 conv + bn3 +
#           residual (+relu)].  Grid axis = phase (1 for normal convs, 4 for
#           the sub-pixel transposed conv).
# ---------------------------------------------------------------------------
def _conv_tail_kernel(x_ref, w2_ref, s2_ref, b2_ref, w3_ref, s3_ref, b3_ref,
                      r_ref, o_ref, *, taps, n_blocks, Hb, Wb, relu_out):
    Cb = x_ref.shape[0] // n_blocks
    xf = x_ref[...].astype(jnp.float32)
    blocks = [xf[i * Cb:(i + 1) * Cb, :] for i in range(n_blocks)]
    X = _build_taps(blocks, taps, Hb, Wb).astype(jnp.bfloat16)      # (T*Cb, M)
    h2 = jnp.dot(w2_ref[0], X, preferred_element_type=jnp.float32)  # one K-packed matmul
    h2 = jnp.maximum(h2 * s2_ref[...] + b2_ref[...], 0.0).astype(jnp.bfloat16)
    out = jnp.dot(w3_ref[...], h2, preferred_element_type=jnp.float32)
    out = out * s3_ref[...] + b3_ref[...] + r_ref[...].astype(jnp.float32)
    if relu_out:
        out = jnp.maximum(out, 0.0)
    o_ref[...] = out[None].astype(o_ref.dtype)


def conv_tail(x, w2p, s2, b2, w3, s3, b3, res, *, taps, n_blocks, Hb, Wb,
              relu_out, out_dtype=jnp.bfloat16):
    BC, M = x.shape
    P, Cbn, KT = w2p.shape
    Cout = w3.shape[0]
    kernel = functools.partial(_conv_tail_kernel, taps=taps, n_blocks=n_blocks,
                               Hb=Hb, Wb=Wb, relu_out=relu_out)
    return pl.pallas_call(
        kernel,
        out_shape=jax.ShapeDtypeStruct((P, Cout, M), out_dtype),
        grid=(P,),
        in_specs=[
            pl.BlockSpec((BC, M), lambda p: (0, 0)),
            pl.BlockSpec((1, Cbn, KT), lambda p: (p, 0, 0)),
            pl.BlockSpec((Cbn, 1), lambda p: (0, 0)),
            pl.BlockSpec((Cbn, 1), lambda p: (0, 0)),
            pl.BlockSpec((Cout, Cbn), lambda p: (0, 0)),
            pl.BlockSpec((Cout, 1), lambda p: (0, 0)),
            pl.BlockSpec((Cout, 1), lambda p: (0, 0)),
            pl.BlockSpec((Cout, M), lambda p: (0, 0)),
        ],
        out_specs=pl.BlockSpec((1, Cout, M), lambda p: (p, 0, 0)),
        compiler_params=pltpu.CompilerParams(dimension_semantics=("parallel",)),
    )(x.astype(jnp.bfloat16), w2p, s2, b2, w3, s3, b3,
      res.astype(jnp.bfloat16))


# ---------------------------------------------------------------------------
# Kernel C: fully fused stride-selector bottleneck ([trans] -> conv1/bn1/relu
#           -> roll-tap conv2/bn2/relu -> conv3/bn3 + identity/[downsample]
#           + relu) in ONE pallas_call, grid=1, batch folded into lanes.
# ---------------------------------------------------------------------------
def _ss_bottleneck_kernel(*refs, has_trans, has_down, Hb, Wb):
    it = iter(refs)
    x_ref = next(it)
    if has_trans:
        wt, st, bt = next(it), next(it), next(it)
    w1, s1, b1 = next(it), next(it), next(it)
    w2, s2, b2 = next(it), next(it), next(it)
    w3, s3, b3 = next(it), next(it), next(it)
    if has_down:
        wd, sd, bd = next(it), next(it), next(it)
    o_ref = next(it)

    x0 = x_ref[...]
    if has_trans:
        x0 = jnp.maximum(
            jnp.dot(wt[...], x0, preferred_element_type=jnp.float32)
            * st[...] + bt[...], 0.0).astype(jnp.bfloat16)
    h1 = jnp.maximum(
        jnp.dot(w1[...], x0, preferred_element_type=jnp.float32)
        * s1[...] + b1[...], 0.0)
    X = _build_taps([h1], _TAPS_S1, Hb, Wb).astype(jnp.bfloat16)
    h2 = jnp.maximum(
        jnp.dot(w2[...], X, preferred_element_type=jnp.float32)
        * s2[...] + b2[...], 0.0).astype(jnp.bfloat16)
    out = (jnp.dot(w3[...], h2, preferred_element_type=jnp.float32)
           * s3[...] + b3[...])
    if has_down:
        ident = (jnp.dot(wd[...], x0, preferred_element_type=jnp.float32)
                 * sd[...] + bd[...])
    else:
        ident = x0.astype(jnp.float32)
    o_ref[...] = jnp.maximum(out + ident, 0.0).astype(o_ref.dtype)


def ss_bottleneck(x_cm, p, *, H, W, trans=None, out_dtype=jnp.bfloat16):
    Cin, M = x_cm.shape
    has_trans = trans is not None
    has_down = "down" in p
    args = [x_cm.astype(jnp.bfloat16)]
    specs = [pl.BlockSpec((Cin, M), lambda i: (0, 0))]

    def add(q):
        for a in (q["w"], q["s"], q["b"]):
            args.append(a)
            specs.append(pl.BlockSpec(a.shape, lambda i: (0, 0)))

    if has_trans:
        add(trans)
    add(p["conv1"])
    add(p["conv2"])
    add(p["conv3"])
    if has_down:
        add(p["down"])
    Cout = p["conv3"]["w"].shape[0]
    kernel = functools.partial(_ss_bottleneck_kernel, has_trans=has_trans,
                               has_down=has_down, Hb=H, Wb=W)
    return pl.pallas_call(
        kernel,
        out_shape=jax.ShapeDtypeStruct((Cout, M), out_dtype),
        grid=(1,),
        in_specs=specs,
        out_specs=pl.BlockSpec((Cout, M), lambda i: (0, 0)),
    )(*args)


# ---------------------------------------------------------------------------
# Higher-level forward pieces
# ---------------------------------------------------------------------------
def _selector_fwd(conv1_cm, ss, one_hot, *, N, H, W):
    h = ss_bottleneck(conv1_cm, ss["b1"], H=H, W=W, trans=ss["trans"])
    h = ss_bottleneck(h, ss["b2"], H=H, W=W)
    h = ss_bottleneck(h, ss["b3"], H=H, W=W)
    # b4 (conv2 / downsample stride 2): compute the stride-1-equivalent
    # bottleneck fully fused, then subsample -- all post-conv2 ops are
    # pointwise, so strided subsampling commutes with them.
    h = ss_bottleneck(h, ss["b4"], H=H, W=W)
    Ho, Wo = (H + 1) // 2, (W + 1) // 2
    C4 = h.shape[0]
    h = h.reshape(C4, N, H, W)[:, :, ::2, ::2].reshape(C4, N * Ho * Wo)
    h = ss_bottleneck(h, ss["b5"], H=Ho, W=Wo)
    h = ss_bottleneck(h, ss["b6"], H=Ho, W=Wo)
    h = ss_bottleneck(h, ss["b7"], H=Ho, W=Wo)
    gap = h.astype(jnp.float32).reshape(C4, N, Ho * Wo).mean(axis=-1).T
    feat = jnp.concatenate([gap, one_hot.astype(jnp.float32)], axis=1)
    # tiny FC (N=2, K=35, C=3): plain jnp, pallas_call overhead >> its FLOPs
    return feat @ ss["fc_w"].T + ss["fc_b"]


@functools.partial(jax.jit, static_argnames=("N", "H", "W"))
def _select_jit(conv1_cm, ss, one_hot, vmask, *, N, H, W):
    logits = _selector_fwd(conv1_cm, ss, one_hot, N=N, H=H, W=W)
    ss_sum = jnp.sum(jax.nn.softmax(logits, axis=1), axis=0)
    choice = jnp.argmax(jnp.where(vmask, ss_sum, -jnp.inf))
    return logits, choice


@jax.jit
def _head_jit(p1, x_nchw):
    N, C, H, W = x_nchw.shape
    x_cm = jnp.transpose(x_nchw, (1, 0, 2, 3)).reshape(C, N * H * W)
    x_cm = x_cm.astype(jnp.bfloat16)
    conv1_cm = matmul_cm(x_cm, p1["w"], p1["s"], p1["b"], relu=True)
    return x_cm, conv1_cm


def _avgpool2_cm(x_cm, N, H, W):
    # adaptive_avg_pool2d for the exactly-divisible 2x case (FeatureResize).
    C = x_cm.shape[0]
    Ho, Wo = H // 2, W // 2
    xr = x_cm.astype(jnp.float32).reshape(C, N, Ho, 2, Wo, 2)
    return xr.mean(axis=(3, 5)).reshape(C, N * Ho * Wo)


@functools.partial(jax.jit,
                   static_argnames=("use_tconv", "sh", "sw", "has_down",
                                    "N", "H", "W"))
def _tail_jit(p2, p3, pdown, x_cm, conv1_cm, *, use_tconv, sh, sw, has_down,
              N, H, W):
    Cbn = conv1_cm.shape[0]
    Cout = p3["w"].shape[0]
    # identity path: 1x1 downsample (stride 1) in CM layout; FeatureResize below
    ident = (matmul_cm(x_cm, pdown["w"], pdown["s"], pdown["b"], relu=False)
             if has_down else x_cm)
    if use_tconv:
        # ConvTranspose2d(w.flip.permute, stride=2, pad=1, out_pad=1) via
        # sub-pixel decomposition: one pallas_call over 4 output phases; the
        # nearest-upsampled identity equals the full-res identity per phase.
        Ho, Wo = H * sh, W * sw
        out_ph = conv_tail(conv1_cm, p2["w_t"], p2["s"], p2["b"],
                           p3["w"], p3["s"], p3["b"], ident,
                           taps=_TAPS_T, n_blocks=1, Hb=H, Wb=W,
                           relu_out=False)                        # (4, Cout, M)
        out = out_ph.reshape(sh, sw, Cout, N, H, W)
        out = out.transpose(2, 3, 4, 0, 5, 1).reshape(Cout, N, Ho, Wo)
    elif sh == 1 and sw == 1:
        Ho, Wo = H, W
        out = conv_tail(conv1_cm, p2["w_s"], p2["s"], p2["b"],
                        p3["w"], p3["s"], p3["b"], ident,
                        taps=_TAPS_S1, n_blocks=1, Hb=H, Wb=W,
                        relu_out=False)[0]
        out = out.reshape(Cout, N, Ho, Wo)
    else:
        # strided 3x3 conv: phase-split the tiny bf16 conv1 output so each tap
        # stays a stride-1 roll; the 9 taps still collapse into one K=9*Cbn
        # matmul.  TODO(synk): fold this split into the kernel (strided refs).
        Ho, Wo = H // sh, W // sw
        xph = conv1_cm.reshape(Cbn, N, Ho, sh, Wo, sw)
        xph = xph.transpose(3, 5, 0, 1, 2, 4).reshape(sh * sw * Cbn,
                                                      N * Ho * Wo)
        ident_r = _avgpool2_cm(ident, N, H, W)
        out = conv_tail(xph, p2["w_s"], p2["s"], p2["b"],
                        p3["w"], p3["s"], p3["b"], ident_r,
                        taps=_TAPS_S2, n_blocks=sh * sw, Hb=Ho, Wb=Wo,
                        relu_out=False)[0]
        out = out.reshape(Cout, N, Ho, Wo)
    # CM -> NCHW; kernels store bf16, this fused transpose casts to f32.
    return jnp.transpose(out, (1, 0, 2, 3)).astype(jnp.float32)


def strider_block_forward(params, x_nchw, epsilon, stage, stride_prefix,
                          valid_nexts, manual_stride, stride_options):
    N, Cin, H, W = x_nchw.shape
    num_opts = len(stride_options)
    sb_idx = params["striderblock_index"]

    # conv1 + bn1 + relu (also yields the CM-layout input for the identity)
    x_cm, conv1_cm = _head_jit(params["conv1"], x_nchw)

    # ---- select_stride (host control flow mirrors eager PyTorch) ----
    one_hot = np.zeros((1, num_opts * sb_idx), np.float32)
    for s_idx in range(len(stride_prefix)):
        one_hot[0, num_opts * s_idx + stride_prefix[s_idx]] = 1.0
    one_hot = jnp.asarray(np.repeat(one_hot, N, axis=0))
    vmask = np.zeros((num_opts,), bool)
    vmask[list(valid_nexts)] = True
    vmask = jnp.asarray(vmask)

    sample = random.random()
    if sample > epsilon:
        ss_out, choice = _select_jit(conv1_cm, params["ss"], one_hot, vmask,
                                     N=N, H=H, W=W)
        # single scalar readback (== PyTorch .item()); argmax done on device
        ss_choice = int(jax.device_get(choice))
        ss_preds = ss_out[:, None, :]
    else:
        ss_choice = random.choice(list(valid_nexts))
        if stage == 2:
            ss_out, _ = _select_jit(conv1_cm, params["ss"], one_hot, vmask,
                                    N=N, H=H, W=W)
            ss_preds = ss_out[:, None, :]
        else:
            ss_preds = jnp.zeros((N, num_opts), jnp.float32)
    if manual_stride is not None:
        ss_choice = manual_stride
    ss_choice_arr = jnp.array([[ss_choice]], dtype=jnp.int32)

    use_tconv = bool(stride_options[ss_choice][0])
    sh, sw = (int(v) for v in stride_options[ss_choice][1])
    out = _tail_jit(params["conv2"], params["conv3"], params.get("down"),
                    x_cm, conv1_cm, use_tconv=use_tconv, sh=sh, sw=sw,
                    has_down="down" in params, N=N, H=H, W=W)
    return out, ss_preds, ss_choice_arr


# ---------------------------------------------------------------------------
# Parameter initialization (deterministic, synthetic; kernel-ready layouts)
# ---------------------------------------------------------------------------
def _pack_taps_s1(w9):
    # w9: (9, cin, cout) -> (cout, 9*cin), column block k = w9[k].T
    K, cin, cout = w9.shape
    return jnp.transpose(w9, (2, 0, 1)).reshape(cout, K * cin)


def _pack_taps_tconv(w9):
    # per-output-phase packing for the sub-pixel transposed conv (stride 2).
    K, cin, cout = w9.shape
    w = np.asarray(w9, np.float32)
    out = np.zeros((4, cout, 4 * cin), np.float32)
    for py in (0, 1):
        for px in (0, 1):
            p = py * 2 + px
            for ky in range(3):
                if (py + ky - 1) % 2:
                    continue
                dy = (py + ky - 1) // 2
                for kx in range(3):
                    if (px + kx - 1) % 2:
                        continue
                    dx = (px + kx - 1) // 2
                    si = dy * 2 + dx
                    out[p, :, si * cin:(si + 1) * cin] = w[ky * 3 + kx].T
    return jnp.asarray(out, jnp.bfloat16)


def _init_bn(key, c):
    k1, k2 = jax.random.split(key)
    s = 1.0 + 0.1 * jax.random.normal(k1, (c, 1), jnp.float32)
    b = 0.1 * jax.random.normal(k2, (c, 1), jnp.float32)
    return s, b


def _init_conv1x1(key, cin, cout):
    k1, k2 = jax.random.split(key)
    w = jax.random.normal(k1, (cout, cin), jnp.float32) / math.sqrt(cin)
    s, b = _init_bn(k2, cout)
    return {"w": w.astype(jnp.bfloat16), "s": s, "b": b}


def _init_conv3x3(key, cin, cout, tconv_pack=False):
    k1, k2 = jax.random.split(key)
    w9 = jax.random.normal(k1, (9, cin, cout), jnp.float32) / math.sqrt(9 * cin)
    s, b = _init_bn(k2, cout)
    if tconv_pack:
        return {"w_s": _pack_taps_s1(w9).astype(jnp.bfloat16)[None],
                "w_t": _pack_taps_tconv(w9), "s": s, "b": b}
    return {"w": _pack_taps_s1(w9).astype(jnp.bfloat16), "s": s, "b": b}


def init_bottleneck(key, cin, cbn, cout):
    ks = jax.random.split(key, 4)
    p = {"conv1": _init_conv1x1(ks[0], cin, cbn),
         "conv2": _init_conv3x3(ks[1], cbn, cbn),
         "conv3": _init_conv1x1(ks[2], cbn, cout)}
    if cin != cout:
        p["down"] = _init_conv1x1(ks[3], cin, cout)
    return p


def init_stride_selector(key, in_channels, ss_c, num_opts, sb_idx):
    ks = jax.random.split(key, 10)
    fc_in = ss_c * 4 + num_opts * sb_idx
    return {
        "trans": _init_conv1x1(ks[0], in_channels, ss_c),
        "b1": init_bottleneck(ks[1], ss_c, ss_c // 2, ss_c * 2),
        "b2": init_bottleneck(ks[2], ss_c * 2, ss_c // 2, ss_c * 2),
        "b3": init_bottleneck(ks[3], ss_c * 2, ss_c // 2, ss_c * 2),
        "b4": init_bottleneck(ks[4], ss_c * 2, ss_c, ss_c * 4),
        "b5": init_bottleneck(ks[5], ss_c * 4, ss_c, ss_c * 4),
        "b6": init_bottleneck(ks[6], ss_c * 4, ss_c, ss_c * 4),
        "b7": init_bottleneck(ks[7], ss_c * 4, ss_c, ss_c * 4),
        "fc_w": jax.random.normal(ks[8], (num_opts, fc_in), jnp.float32)
                / math.sqrt(fc_in),
        "fc_b": 0.1 * jax.random.normal(ks[9], (num_opts,), jnp.float32),
    }


def init_strider_block(key, cin, cbn, ss_c, cout, stride_options, sb_idx,
                       full_residual=False):
    ks = jax.random.split(key, 5)
    p = {
        "conv1": _init_conv1x1(ks[0], cin, cbn),
        "conv2": _init_conv3x3(ks[1], cbn, cbn, tconv_pack=True),
        "conv3": _init_conv1x1(ks[2], cbn, cout),
        "ss": init_stride_selector(ks[3], cbn, ss_c, len(stride_options),
                                   sb_idx),
        "striderblock_index": sb_idx,
    }
    if cin != cout or full_residual:
        p["down"] = _init_conv1x1(ks[4], cin, cout)
    return p


# ---------------------------------------------------------------------------
if __name__ == "__main__":
    key = jax.random.PRNGKey(0)
    kp, kx = jax.random.split(key)

    B, Cin, H, W = 2, 8, 16, 16
    Cbn, Css, Cout = 8, 8, 16
    stride_options = ((False, (1, 1)), (False, (2, 2)), (True, (2, 2)))
    sb_idx = 1

    params = init_strider_block(kp, Cin, Cbn, Css, Cout, stride_options, sb_idx)
    x = jax.random.normal(kx, (B, Cin, H, W), jnp.float32)

    random.seed(0)  # mirrors python `random` usage in select_stride
    out, ss_preds, ss_choice = strider_block_forward(
        params, x, epsilon=-1.0, stage=1, stride_prefix=[0],
        valid_nexts=[0, 1, 2], manual_stride=None,
        stride_options=stride_options)

    jax.block_until_ready(out)
    jax.block_until_ready(ss_preds)
    jax.block_until_ready(ss_choice)
    print("KERNEL_OK")
</pallas_src>

<mosaic_0001>
module attributes {stable_mosaic.version = 11 : i64} {
  func.func @_mm_cm_kernel(%arg0: i32, %arg1: memref<8x512xbf16, #tpu.memory_space<vmem>>, %arg2: memref<8x8xbf16, #tpu.memory_space<vmem>>, %arg3: memref<8x1xf32, #tpu.memory_space<vmem>>, %arg4: memref<8x1xf32, #tpu.memory_space<vmem>>, %arg5: memref<8x512xbf16, #tpu.memory_space<vmem>>) attributes {dimension_semantics = [#tpu.dimension_semantics<parallel>], iteration_bounds = array<i64: 1>, scalar_prefetch = 0 : i64, scratch_operands = 0 : i64, tpu.core_type = #tpu.core_type<tc>, window_params = [{transform_indices = @transform_0, window_bounds = array<i64: 8, 512>}, {pipeline_mode = #tpu.pipeline_mode<synchronous>, transform_indices = @transform_1, window_bounds = array<i64: 8, 8>}, {pipeline_mode = #tpu.pipeline_mode<synchronous>, transform_indices = @transform_2, window_bounds = array<i64: 8, 1>}, {pipeline_mode = #tpu.pipeline_mode<synchronous>, transform_indices = @transform_3, window_bounds = array<i64: 8, 1>}, {transform_indices = @transform_4, window_bounds = array<i64: 8, 512>}]} {
    %c0 = arith.constant 0 : index
    %c0_0 = arith.constant 0 : index
    %0 = vector.load %arg2[%c0, %c0_0] : memref<8x8xbf16, #tpu.memory_space<vmem>>, vector<8x8xbf16>
    %c0_1 = arith.constant 0 : index
    %c0_2 = arith.constant 0 : index
    %1 = vector.load %arg1[%c0_1, %c0_2] : memref<8x512xbf16, #tpu.memory_space<vmem>>, vector<8x512xbf16>
    %cst = arith.constant dense<0.000000e+00> : vector<8x512xf32>
    %2 = tpu.matmul %0, %1, %cst {dimension_numbers = #tpu.dot_dimension_numbers<[1], [0], [0], [1], [0, 0, 1, 1], [], []>} : vector<8x8xbf16>, vector<8x512xbf16>, vector<8x512xf32> -> vector<8x512xf32>
    %c0_3 = arith.constant 0 : index
    %c0_4 = arith.constant 0 : index
    %3 = vector.load %arg3[%c0_3, %c0_4] : memref<8x1xf32, #tpu.memory_space<vmem>>, vector<8x1xf32>
    %4 = vector.broadcast %3 : vector<8x1xf32> to vector<8x512xf32>
    %5 = arith.mulf %2, %4 : vector<8x512xf32>
    %c0_5 = arith.constant 0 : index
    %c0_6 = arith.constant 0 : index
    %6 = vector.load %arg4[%c0_5, %c0_6] : memref<8x1xf32, #tpu.memory_space<vmem>>, vector<8x1xf32>
    %7 = vector.broadcast %6 : vector<8x1xf32> to vector<8x512xf32>
    %8 = arith.addf %5, %7 : vector<8x512xf32>
    %cst_7 = arith.constant 0.000000e+00 : f32
    %9 = vector.broadcast %cst_7 : f32 to vector<8x512xf32>
    %10 = arith.maximumf %8, %9 : vector<8x512xf32>
    %11 = arith.truncf %10 : vector<8x512xf32> to vector<8x512xbf16>
    %c0_8 = arith.constant 0 : index
    %c0_9 = arith.constant 0 : index
    %12 = vector.load %arg5[%c0_8, %c0_9] : memref<8x512xbf16, #tpu.memory_space<vmem>>, vector<8x512xbf16>
    tpu.vector_store %arg5[%c0_8, %c0_9], %11 {strides = array<i32>} : memref<8x512xbf16, #tpu.memory_space<vmem>>, vector<8x512xbf16>,
    return
  }
  func.func @transform_0(%arg0: i32) -> (i32, i32) {
    %c0_i32 = arith.constant 0 : i32
    %c0_i32_0 = arith.constant 0 : i32
    return %c0_i32, %arg0 : i32, i32
  }
  func.func @transform_1(%arg0: i32) -> (i32, i32) {
    %c0_i32 = arith.constant 0 : i32
    %c0_i32_0 = arith.constant 0 : i32
    %c0_i32_1 = arith.constant 0 : i32
    return %c0_i32, %c0_i32_0 : i32, i32
  }
  func.func @transform_2(%arg0: i32) -> (i32, i32) {
    %c0_i32 = arith.constant 0 : i32
    %c0_i32_0 = arith.constant 0 : i32
    %c0_i32_1 = arith.constant 0 : i32
    return %c0_i32, %c0_i32_0 : i32, i32
  }
  func.func @transform_3(%arg0: i32) -> (i32, i32) {
    %c0_i32 = arith.constant 0 : i32
    %c0_i32_0 = arith.constant 0 : i32
    %c0_i32_1 = arith.constant 0 : i32
    return %c0_i32, %c0_i32_0 : i32, i32
  }
  func.func @transform_4(%arg0: i32) -> (i32, i32) {
    %c0_i32 = arith.constant 0 : i32
    %c0_i32_0 = arith.constant 0 : i32
    return %c0_i32, %arg0 : i32, i32
  }
}

</mosaic_0001>

<llo_original>
// kernel: _head_jit.1
$region0: #{_head_jit.1}
  #allocation0 [shape = 'u32[]', space=smem, size = 0x4, offset = 0x4, fixed_abs, tag = 'smem constant byte address 0x4 - core index']
  #allocation1 [shape = 'u32[144,128]{1,0:T(1,128)}', space=vmem, size = 0x12000, scoped, tag = 'internal scratch']
  %s0 = inlined_call_operand.vmem [shape: bf16[8,512], index: 0, kind: input, shape index: {}]
  %s1 = inlined_call_operand.vmem [shape: bf16[8,8], index: 1, kind: input, shape index: {}]
  %s2 = inlined_call_operand.vmem [shape: f32[8,1], index: 2, kind: input, shape index: {}]
  %s3 = inlined_call_operand.vmem [shape: f32[8,1], index: 3, kind: input, shape index: {}]
  %s4 = inlined_call_operand.hbm [shape: bf16[8,512], index: 4, kind: output, shape index: {}]
  %s5 = sld [smem:[#allocation0]]
  $region26: #{_head_jit.1} parent=0
    _
  %s7 = ssub.s32 1, %s5
  %s8 = scalar_select 0, %s7, %s5
  $region1: #{_head_jit.1} parent=0
    #allocation2 [shape = 'u8[8192]{0}', space=vmem, size = 0x2000, scoped, tag = 'output window, operand 0, single buffered']
    #allocation3 [shape = 's32[1]{0}', space=sflag, size = 0x4, scoped, tag = 'scoped memory for _head_jit.1']
    %9 = vsyncpa [#allocation3], 0
    // Predicated region
    $region2: #{_head_jit.1} parent=1 // pred_check
      _
    $region3: #{_head_jit.1} parent=1 // pred_check_branch
      %11 = sbr.rel (0) target = $region5
    $region4: #{_head_jit.1} parent=1 // pred_region
      _
    $region5: #{_head_jit.1} parent=1 // pred_fallthru
      _
    // Predicated region
    $region6: #{_head_jit.1} parent=1 // pred_check
      _
    $region7: #{_head_jit.1} parent=1 // pred_check_branch
      %13 = sbr.rel (0) target = $region9
    $region8: #{_head_jit.1} parent=1 // pred_region
      _
    $region9: #{_head_jit.1} parent=1 // pred_fallthru
      _
    // Predicated region
    $region10: #{_head_jit.1} parent=1 // pred_check
      _
    $region11: #{_head_jit.1} parent=1 // pred_check_branch
      %15 = sbr.rel (0) target = $region13
    $region12: #{_head_jit.1} parent=1 // pred_region
      _
    $region13: #{_head_jit.1} parent=1 // pred_fallthru
      _
    // Predicated region
    $region14: #{_head_jit.1} parent=1 // pred_check
      _
    $region15: #{_head_jit.1} parent=1 // pred_check_branch
      %17 = sbr.rel (0) target = $region17
    $region16: #{_head_jit.1} parent=1 // pred_region
      _
    $region17: #{_head_jit.1} parent=1 // pred_fallthru
      _
    %v19 = vld [vmem:[%s1] sm:$0xf]
    %v20 = vld [vmem:[%s0] sm:$0xff]
    %v21 = vld [vmem:[%s0 + $0x8] sm:$0xff]
    %v24 = vunpack.c.l.b16 %v20
    %v25 = vunpack.c.h.b16 %v20
    %v26 = vunpack.c.l.b16 %v21
    %v27 = vunpack.c.h.b16 %v21
    %v28 = vpack.c.b16 %v24, %v24
    %v29 = vpack.c.b16 %v25, %v25
    %v30 = vpack.c.b16 %v26, %v26
    %v31 = vpack.c.b16 %v27, %v27
    %vm32 = vcmask 64512
    %v34 = vsel %vm32, %v19, 0
    %vm36 = vcmask 1043456
    %v38 = vsel %vm36, %v28, 0
    %v41 = vsel %vm36, %v29, 0
    %v44 = vsel %vm36, %v30, 0
    %v47 = vsel %vm36, %v31, 0
    %49 = vmatprep.subr.bf16.mxu0 %v41
    %50 = vmatpush1.bf16.msra.mxu0 %v38
    %51 = vmatprep.subr.bf16.mxu0 0
    %52 = vmatpush1.bf16.msra.mxu0 0
    %53 = vmatprep.subr.bf16.mxu0 0
    %54 = vmatpush1.bf16.msra.mxu0 0
    %55 = vmatprep.subr.bf16.mxu0 0
    %56 = vmatpush1.bf16.msra.mxu0 0
    %57 = vmatprep.subr.bf16.mxu0 0
    %58 = vmatpush1.bf16.msra.mxu0 0
    %59 = vmatprep.subr.bf16.mxu0 0
    %60 = vmatpush1.bf16.msra.mxu0 0
    %61 = vmatprep.subr.bf16.mxu0 0
    %62 = vmatpush1.bf16.msra.mxu0 0
    %63 = vmatprep.subr.bf16.mxu0 0
    %64 = vmatpush1.bf16.msra.mxu0 0
    %65 = vmatprep.subr.bf16.mxu0 0
    %66 = vmatpush1.bf16.msra.mxu0 0
    %67 = vmatprep.subr.bf16.mxu0 0
    %68 = vmatpush1.bf16.msra.mxu0 0
    %69 = vmatprep.subr.bf16.mxu0 0
    %70 = vmatpush1.bf16.msra.mxu0 0
    %71 = vmatprep.subr.bf16.mxu0 0
    %72 = vmatpush1.bf16.msra.mxu0 0
    %73 = vmatprep.subr.bf16.mxu0 0
    %74 = vmatpush1.bf16.msra.mxu0 0
    %75 = vmatprep.subr.bf16.mxu0 0
    %76 = vmatpush1.bf16.msra.mxu0 0
    %77 = vmatprep.subr.bf16.mxu0 0
    %78 = vmatpush1.bf16.msra.mxu0 0
    %79 = vmatprep.subr.bf16.mxu0 0
    %80 = vmatpush1.bf16.msra.mxu0 0
    %81 = vmatprep.mubr.bf16.mxu0 0
    %82 = vmatmul.mubr.bf16.gmra.mrb[0].mxu0 %v34
    %v83 = vpop.f32.mrb[0].mxu0
    %v84 = vadd.f32 0.0, %v83
    %v85 = vpop.f32.mrb[0].mxu0
    %v86 = vadd.f32 0.0, %v85
    %v87 = vpop.f32.mrb[0].mxu0
    %v88 = vpop.f32.mrb[0].mxu0
    %89 = vdwg.mxu0
    %90 = vmatprep.subr.bf16.mxu0 %v47
    %91 = vmatpush1.bf16.msra.mxu0 %v44
    %92 = vmatprep.subr.bf16.mxu0 0
    %93 = vmatpush1.bf16.msra.mxu0 0
    %94 = vmatprep.subr.bf16.mxu0 0
    %95 = vmatpush1.bf16.msra.mxu0 0
    %96 = vmatprep.subr.bf16.mxu0 0
    %97 = vmatpush1.bf16.msra.mxu0 0
    %98 = vmatprep.subr.bf16.mxu0 0
    %99 = vmatpush1.bf16.msra.mxu0 0
    %100 = vmatprep.subr.bf16.mxu0 0
    %101 = vmatpush1.bf16.msra.mxu0 0
    %102 = vmatprep.subr.bf16.mxu0 0
    %103 = vmatpush1.bf16.msra.mxu0 0
    %104 = vmatprep.subr.bf16.mxu0 0
    %105 = vmatpush1.bf16.msra.mxu0 0
    %106 = vmatprep.subr.bf16.mxu0 0
    %107 = vmatpush1.bf16.msra.mxu0 0
    %108 = vmatprep.subr.bf16.mxu0 0
    %109 = vmatpush1.bf16.msra.mxu0 0
    %110 = vmatprep.subr.bf16.mxu0 0
    %111 = vmatpush1.bf16.msra.mxu0 0
    %112 = vmatprep.subr.bf16.mxu0 0
    %113 = vmatpush1.bf16.msra.mxu0 0
    %114 = vmatprep.subr.bf16.mxu0 0
    %115 = vmatpush1.bf16.msra.mxu0 0
    %116 = vmatprep.subr.bf16.mxu0 0
    %117 = vmatpush1.bf16.msra.mxu0 0
    %118 = vmatprep.subr.bf16.mxu0 0
    %119 = vmatpush1.bf16.msra.mxu0 0
    %120 = vmatprep.subr.bf16.mxu0 0
    %121 = vmatpush1.bf16.msra.mxu0 0
    %122 = vmatprep.mubr.bf16.mxu0 0
    %123 = vmatmul.mubr.bf16.gmra.mrb[0].mxu0 %v34
    %v124 = vpop.f32.mrb[0].mxu0
    %v125 = vadd.f32 0.0, %v124
    %v126 = vpop.f32.mrb[0].mxu0
    %v127 = vadd.f32 0.0, %v126
    %v128 = vpop.f32.mrb[0].mxu0
    %v129 = vpop.f32.mrb[0].mxu0
    %130 = vdwg.mxu0
    %v131 = vld [vmem:[%s2] sm:$0xff]
    %133 = vset.pattern.permute.xlu0 0
    %134 = vperm.xlu0 %133, %v131
    %v135 = vpop.permute.xlu0 %134
    %v137 = vmul.f32 %v84, %v135
    %v138 = vmul.f32 %v86, %v135
    %v139 = vmul.f32 %v125, %v135
    %v140 = vmul.f32 %v127, %v135
    %v141 = vld [vmem:[%s3] sm:$0xff]
    %143 = vset.pattern.permute.xlu0 0
    %144 = vperm.xlu0 %143, %v141
    %v145 = vpop.permute.xlu0 %144
    %v147 = vadd.f32 %v137, %v145
    %v148 = vadd.f32 %v138, %v145
    %v149 = vadd.f32 %v139, %v145
    %v150 = vadd.f32 %v140, %v145
    %v151 = vmax.f32 %v147, 0.0
    %v152 = vmax.f32 %v148, 0.0
    %v153 = vmax.f32 %v149, 0.0
    %v154 = vmax.f32 %v150, 0.0
    %v155 = vpack.c.bf16 %v151, %v151
    %v156 = vpack.c.bf16 %v152, %v152
    %v157 = vpack.c.bf16 %v153, %v153
    %v158 = vpack.c.bf16 %v154, %v154
    %v163 = vunpack.c.l.b16 %v155
    %v164 = vunpack.c.l.b16 %v156
    %v165 = vunpack.c.l.b16 %v157
    %v166 = vunpack.c.l.b16 %v158
    %v167 = vpack.c.b16 %v164, %v163
    %v168 = vpack.c.b16 %v166, %v165
    %171 = vst [vmem:[#allocation2] sm:$0xff] %v167
    %172 = vst [vmem:[#allocation2 + $0x8] sm:$0xff] %v168
    // Predicated region
    $region18: #{_head_jit.1} parent=1 // pred_check
      _
    $region19: #{_head_jit.1} parent=1 // pred_check_branch
      %174 = sbr.rel (0) target = $region21
    $region20: #{_head_jit.1} parent=1 // pred_region
      %s176 = ssub.s32 256, 256
      %177 = vsyncadd [#allocation3], %s176
      %s179 = sshll.u32 [#allocation2], 4
      %s180 = int_to_ptr.vmem [resolvable:$true] %s179
      %182 = dma.vmem_to_hbm [thread:$0]  %s180, 256, %s4, [#allocation3]
    $region21: #{_head_jit.1} parent=1 // pred_fallthru
      _
    // Predicated region
    $region22: #{_head_jit.1} parent=1 // pred_check
      _
    $region23: #{_head_jit.1} parent=1 // pred_check_branch
      %184 = sbr.rel (0) target = $region25
    $region24: #{_head_jit.1} parent=1 // pred_region
      %185 = dma.done [#allocation3], 256
    $region25: #{_head_jit.1} parent=1 // pred_fallthru
      _
    %186 = vsyncpa [#allocation3], 1

</llo_original>
